<compile_context>
chip_gen: v7x
topology: tpu7x:2x2x1
jax: 0.10.0
libtpu: 0.0.40
codegen_flags: <defaults>
</compile_context>

<pallas_src>
import functools

import jax
import jax.numpy as jnp
from jax.experimental import pallas as pl
from jax.experimental.pallas import tpu as pltpu


_TARGET_TILE_BYTES = 8 * 1024 * 1024   # ~8 MiB of VMEM per pipeline step
_VMEM_LIMIT_BYTES = 48 * 1024 * 1024   # > v5e 16 MiB default, < v7x 64 MiB physical
_MASK_COL_ROW_BYTES = 128 * 4          # a (tn, 1) f32 column pads to 128 lanes in VMEM


def _round_up(x, m):
    return (x + m - 1) // m * m


def _plan_rows(n, row_bytes, budget):
    """Pick (tn, n_pad): tn multiple of 8, n_pad multiple of tn."""
    max_rows = max(8, (budget // max(row_bytes, 1)) // 8 * 8)
    n8 = _round_up(n, 8)
    if n8 <= max_rows:
        return n8, n8                       # whole n in a single reduction step
    # Prefer an exact divisor of n (no padding copy) if it keeps tiles large.
    t = max_rows
    while t >= 8:
        if n % t == 0:
            break
        t -= 8
    else:
        t = 0
    if t >= max(8, max_rows // 2):
        return t, n
    # Otherwise zero-pad n up to a multiple of the budget-sized tile.
    return max_rows, _round_up(n, max_rows)


def _plan_channels(bs, c, itemsize, budget):
    """Pick (tc, c_pad): full-channel tiles whenever they fit the budget."""
    if c * 8 * itemsize <= budget:
        tc, c_pad = c, c
        # bs == 1 leaves no "parallel" work for the 2nd v7x tensorcore: split c.
        if bs == 1 and c % 256 == 0:
            tc = c // 2
        return tc, c_pad
    c_pad = _round_up(c, 128)
    tc = max(128, (budget // (8 * itemsize)) // 128 * 128)
    tc = min(tc, c_pad)
    while c_pad % tc:
        tc -= 128
    return tc, c_pad


def _pick_bb(bs, step_bytes, budget, single_step):
    """Batch-block factor: full bs, or a multiple of 8 dividing bs, if it fits."""
    if not single_step:
        return 1
    bb = 1
    for cand in (bs, 32, 16, 8):
        if cand <= 1 or bs % cand:
            continue
        if cand != bs and cand % 8:   # out block (bb, tc): bb must be %8==0 or ==bs
            continue
        if cand * step_bytes <= budget and cand > bb:
            bb = cand
    return bb


# ---------------------------------------------------------------------------
# Masked sum: out[b] = sum_n mask[b,n] * vals[b,n,:]
# ---------------------------------------------------------------------------
def _masked_sum_kernel(mask_ref, vals_ref, out_ref, acc_ref):
    # mask_ref: (bb, tn, 1) f32   vals_ref: (bb, tn, tc)
    # out_ref:  (bb, tc)          acc_ref:  (bb, tc) f32 scratch
    kn = pl.program_id(2)

    @pl.when(kn == 0)
    def _init():
        acc_ref[...] = jnp.zeros_like(acc_ref)

    # VPU path: per-row mask lane-broadcast + sublane sum (stays under the HBM
    # DMA time on v5e/v6e/v7x; avoids the M=1 MXU weight-load cadence).
    v = vals_ref[...].astype(jnp.float32)
    acc_ref[...] += jnp.sum(v * mask_ref[...], axis=1)

    @pl.when(kn == pl.num_programs(2) - 1)
    def _finalize():
        out_ref[...] = acc_ref[...].astype(out_ref.dtype)


def _masked_sum(vals, mask, *, target_tile_bytes):
    bs, n, c = vals.shape
    itemsize = jnp.dtype(vals.dtype).itemsize

    tc, c_pad = _plan_channels(bs, c, itemsize, target_tile_bytes)
    row_bytes = tc * itemsize + _MASK_COL_ROW_BYTES
    tn, n_pad = _plan_rows(n, row_bytes, target_tile_bytes)
    bb = _pick_bb(bs, tn * row_bytes, target_tile_bytes, single_step=(n_pad == tn))

    mask_f = mask.astype(jnp.float32)
    if n_pad != n:                      # zero padding keeps the masked sum exact
        vals = jnp.pad(vals, ((0, 0), (0, n_pad - n), (0, 0)))
        mask_f = jnp.pad(mask_f, ((0, 0), (0, n_pad - n)))
    if c_pad != c:
        vals = jnp.pad(vals, ((0, 0), (0, 0), (0, c_pad - c)))
    mask_col = mask_f[..., None]        # (bs, n_pad, 1): pure lane-broadcast in-kernel

    grid = (bs // bb, c_pad // tc, n_pad // tn)
    cost = pl.CostEstimate(
        flops=2 * bs * n_pad * c_pad,
        transcendentals=0,
        bytes_accessed=int(vals.size) * itemsize + int(mask_col.size) * 4
        + bs * c_pad * itemsize)

    # TODO(synk): sweep pipeline_mode=pl.Buffered(3) on the vals spec on real
    # shapes (cheap to test, a few % typical when per-step compute is ~zero).
    out = pl.pallas_call(
        _masked_sum_kernel,
        out_shape=jax.ShapeDtypeStruct((bs, c_pad), vals.dtype),
        grid_spec=pltpu.PrefetchScalarGridSpec(
            num_scalar_prefetch=0,
            grid=grid,
            in_specs=[
                pl.BlockSpec((bb, tn, 1), lambda ib, jc, kn: (ib, kn, 0)),
                pl.BlockSpec((bb, tn, tc), lambda ib, jc, kn: (ib, kn, jc)),
            ],
            out_specs=pl.BlockSpec((bb, tc), lambda ib, jc, kn: (ib, jc)),
            scratch_shapes=[pltpu.VMEM((bb, tc), jnp.float32)],
        ),
        compiler_params=pltpu.CompilerParams(
            dimension_semantics=("parallel", "parallel", "arbitrary"),
            vmem_limit_bytes=_VMEM_LIMIT_BYTES,
        ),
        cost_estimate=cost,
    )(mask_col, vals)
    return out[:, :c] if c_pad != c else out


# ---------------------------------------------------------------------------
# Plain mean over n (len(x) == 2 path): no mask input at all.
# ---------------------------------------------------------------------------
def _mean_pool_kernel(vals_ref, out_ref, acc_ref, *, inv_n):
    kn = pl.program_id(2)

    @pl.when(kn == 0)
    def _init():
        acc_ref[...] = jnp.zeros_like(acc_ref)

    acc_ref[...] += jnp.sum(vals_ref[...].astype(jnp.float32), axis=1)

    @pl.when(kn == pl.num_programs(2) - 1)
    def _finalize():
        out_ref[...] = (acc_ref[...] * inv_n).astype(out_ref.dtype)


def _mean_pool(vals, *, target_tile_bytes):
    bs, n, c = vals.shape
    itemsize = jnp.dtype(vals.dtype).itemsize

    tc, c_pad = _plan_channels(bs, c, itemsize, target_tile_bytes)
    row_bytes = tc * itemsize
    tn, n_pad = _plan_rows(n, row_bytes, target_tile_bytes)
    bb = _pick_bb(bs, tn * row_bytes, target_tile_bytes, single_step=(n_pad == tn))

    if n_pad != n:                      # zero rows do not change the sum
        vals = jnp.pad(vals, ((0, 0), (0, n_pad - n), (0, 0)))
    if c_pad != c:
        vals = jnp.pad(vals, ((0, 0), (0, 0), (0, c_pad - c)))

    grid = (bs // bb, c_pad // tc, n_pad // tn)
    cost = pl.CostEstimate(
        flops=bs * n_pad * c_pad,
        transcendentals=0,
        bytes_accessed=int(vals.size) * itemsize + bs * c_pad * itemsize)

    kernel = functools.partial(_mean_pool_kernel, inv_n=1.0 / n)   # original n
    out = pl.pallas_call(
        kernel,
        out_shape=jax.ShapeDtypeStruct((bs, c_pad), vals.dtype),
        grid_spec=pltpu.PrefetchScalarGridSpec(
            num_scalar_prefetch=0,
            grid=grid,
            in_specs=[pl.BlockSpec((bb, tn, tc), lambda ib, jc, kn: (ib, kn, jc))],
            out_specs=pl.BlockSpec((bb, tc), lambda ib, jc, kn: (ib, jc)),
            scratch_shapes=[pltpu.VMEM((bb, tc), jnp.float32)],
        ),
        compiler_params=pltpu.CompilerParams(
            dimension_semantics=("parallel", "parallel", "arbitrary"),
            vmem_limit_bytes=_VMEM_LIMIT_BYTES,
        ),
        cost_estimate=cost,
    )(vals)
    return out[:, :c] if c_pad != c else out


def global_pool(x, mean=False, *, target_tile_bytes=_TARGET_TILE_BYTES):
    """x is a list/tuple: [coords, vals, mask] or [coords, vals]."""
    if len(x) == 2:
        _, vals = x
        return _mean_pool(vals, target_tile_bytes=target_tile_bytes)
    _, vals, mask = x
    out = _masked_sum(vals, mask, target_tile_bytes=target_tile_bytes)
    if mean:
        # Mask count hoisted out of the kernel: one tiny elementwise op on (bs, c).
        cnt = jnp.sum(mask.astype(jnp.float32), axis=-1, keepdims=True)
        out = out / cnt.astype(out.dtype)
    return out


def _reference(x, mean=False):
    if len(x) == 2:
        return jnp.mean(x[1], axis=1)
    _, vals, mask = x
    summed = jnp.sum(jnp.where(mask[..., None], vals, jnp.zeros_like(vals)), axis=1)
    if mean:
        summed = summed / jnp.sum(mask, axis=-1, keepdims=True)
    return summed


if __name__ == "__main__":
    base_key = jax.random.PRNGKey(0)
    case_idx = [0]

    def run_case(bs, n, c, *, mean, with_mask=True, **kw):
        case_idx[0] += 1
        k1, k2, k3 = jax.random.split(jax.random.fold_in(base_key, case_idx[0]), 3)
        coords = jax.random.normal(k1, (bs, n, 3), dtype=jnp.float32)
        vals = jax.random.normal(k2, (bs, n, c), dtype=jnp.float32)
        if with_mask:
            mask = jax.random.uniform(k3, (bs, n)) > 0.3
            mask = mask.at[:, 0].set(True)   # avoid all-empty rows (nan in mean)
            x = [coords, vals, mask]
        else:
            x = [coords, vals]
        out = jax.block_until_ready(global_pool(x, mean=mean, **kw))
        ref = _reference(x, mean=mean)
        assert out.shape == ref.shape, (out.shape, ref.shape)
        assert jnp.allclose(out, ref, atol=1e-4, rtol=1e-4), (bs, n, c, mean)

    # small aligned shapes (single-step, batch-blocked path); masked sum/mean + len-2
    run_case(2, 8, 32, mean=False)
    run_case(2, 8, 32, mean=True)
    run_case(2, 8, 32, mean=False, with_mask=False)

    # multi-step n reduction + accumulator (small tile budget forces n tiling)
    run_case(2, 256, 256, mean=True, target_tile_bytes=64 * 1024)
    run_case(2, 256, 256, mean=False, with_mask=False, target_tile_bytes=64 * 1024)

    # awkward n -> zero-padding path (and mean over the ORIGINAL n for len-2)
    run_case(2, 100, 32, mean=True)
    run_case(2, 100, 32, mean=False, with_mask=False)

    # channel-split path (budget too small for full c)
    run_case(2, 64, 256, mean=False, target_tile_bytes=4 * 1024)

    # bs == 1: channel axis split in two to feed both v7x tensorcores
    run_case(1, 256, 256, mean=True)

    print("KERNEL_OK")
</pallas_src>

<mosaic_0001>
module attributes {stable_mosaic.version = 11 : i64} {
  func.func @_masked_sum_kernel(%arg0: i32, %arg1: i32, %arg2: i32, %arg3: memref<2x8x1xf32, #tpu.memory_space<vmem>>, %arg4: memref<2x8x32xf32, #tpu.memory_space<vmem>>, %arg5: memref<2x32xf32, #tpu.memory_space<vmem>>, %arg6: memref<2x32xf32, #tpu.memory_space<vmem>>) attributes {dimension_semantics = [#tpu.dimension_semantics<parallel>, #tpu.dimension_semantics<parallel>, #tpu.dimension_semantics<arbitrary>], iteration_bounds = array<i64: 1, 1, 1>, scalar_prefetch = 0 : i64, scratch_operands = 1 : i64, tpu.core_type = #tpu.core_type<tc>, window_params = [{transform_indices = @transform_0, window_bounds = array<i64: 2, 8, 1>}, {transform_indices = @transform_1, window_bounds = array<i64: 2, 8, 32>}, {transform_indices = @transform_2, window_bounds = array<i64: 2, 32>}]} {
    %c0_i32 = arith.constant 0 : i32
    %0 = arith.cmpi eq, %arg2, %c0_i32 : i32
    %1 = arith.extui %0 : i1 to i32
    %c0_i32_0 = arith.constant 0 : i32
    %2 = arith.cmpi ne, %1, %c0_i32_0 : i32
    scf.if %2 {
      %cst_12 = arith.constant 0.000000e+00 : f32
      %14 = vector.broadcast %cst_12 : f32 to vector<2x32xf32>
      %c0_13 = arith.constant 0 : index
      %c0_14 = arith.constant 0 : index
      %15 = vector.load %arg6[%c0_13, %c0_14] : memref<2x32xf32, #tpu.memory_space<vmem>>, vector<2x32xf32>
      tpu.vector_store %arg6[%c0_13, %c0_14], %14 {strides = array<i32>} : memref<2x32xf32, #tpu.memory_space<vmem>>, vector<2x32xf32>,
    } else {
    }
    %c0 = arith.constant 0 : index
    %c0_1 = arith.constant 0 : index
    %c0_2 = arith.constant 0 : index
    %3 = vector.load %arg4[%c0, %c0_1, %c0_2] : memref<2x8x32xf32, #tpu.memory_space<vmem>>, vector<2x8x32xf32>
    %c0_3 = arith.constant 0 : index
    %c0_4 = arith.constant 0 : index
    %4 = vector.load %arg6[%c0_3, %c0_4] : memref<2x32xf32, #tpu.memory_space<vmem>>, vector<2x32xf32>
    %c0_5 = arith.constant 0 : index
    %c0_6 = arith.constant 0 : index
    %c0_7 = arith.constant 0 : index
    %5 = vector.load %arg3[%c0_5, %c0_6, %c0_7] : memref<2x8x1xf32, #tpu.memory_space<vmem>>, vector<2x8x1xf32>
    %6 = vector.broadcast %5 : vector<2x8x1xf32> to vector<2x8x32xf32>
    %7 = arith.mulf %3, %6 : vector<2x8x32xf32>
    %cst = arith.constant dense<0.000000e+00> : vector<2x32xf32>
    %8 = vector.multi_reduction <add>, %7, %cst [1] : vector<2x8x32xf32> to vector<2x32xf32>
    %9 = arith.addf %4, %8 : vector<2x32xf32>
    %c0_8 = arith.constant 0 : index
    %c0_9 = arith.constant 0 : index
    %10 = vector.load %arg6[%c0_8, %c0_9] : memref<2x32xf32, #tpu.memory_space<vmem>>, vector<2x32xf32>
    tpu.vector_store %arg6[%c0_8, %c0_9], %9 {strides = array<i32>} : memref<2x32xf32, #tpu.memory_space<vmem>>, vector<2x32xf32>,
    %c0_i32_10 = arith.constant 0 : i32
    %11 = arith.cmpi eq, %arg2, %c0_i32_10 : i32
    %12 = arith.extui %11 : i1 to i32
    %c0_i32_11 = arith.constant 0 : i32
    %13 = arith.cmpi ne, %12, %c0_i32_11 : i32
    scf.if %13 {
      %c0_12 = arith.constant 0 : index
      %c0_13 = arith.constant 0 : index
      %14 = vector.load %arg6[%c0_12, %c0_13] : memref<2x32xf32, #tpu.memory_space<vmem>>, vector<2x32xf32>
      %c0_14 = arith.constant 0 : index
      %c0_15 = arith.constant 0 : index
      %15 = vector.load %arg5[%c0_14, %c0_15] : memref<2x32xf32, #tpu.memory_space<vmem>>, vector<2x32xf32>
      tpu.vector_store %arg5[%c0_14, %c0_15], %14 {strides = array<i32>} : memref<2x32xf32, #tpu.memory_space<vmem>>, vector<2x32xf32>,
    } else {
    }
    return
  }
  func.func @transform_0(%arg0: i32, %arg1: i32, %arg2: i32) -> (i32, i32, i32) {
    %c0_i32 = arith.constant 0 : i32
    %c0_i32_0 = arith.constant 0 : i32
    return %arg0, %arg2, %c0_i32 : i32, i32, i32
  }
  func.func @transform_1(%arg0: i32, %arg1: i32, %arg2: i32) -> (i32, i32, i32) {
    %c0_i32 = arith.constant 0 : i32
    return %arg0, %arg2, %arg1 : i32, i32, i32
  }
  func.func @transform_2(%arg0: i32, %arg1: i32, %arg2: i32) -> (i32, i32) {
    %c0_i32 = arith.constant 0 : i32
    return %arg0, %arg1 : i32, i32
  }
}

</mosaic_0001>

<llo_original>
// kernel: tpu_custom_call.1
$region0: #{tpu_custom_call.1}
  #allocation0 [shape = 'u32[]', space=smem, size = 0x4, offset = 0x4, fixed_abs, tag = 'smem constant byte address 0x4 - core index']
  #allocation1 [shape = 'u32[144,128]{1,0:T(1,128)}', space=vmem, size = 0x12000, scoped, tag = 'internal scratch']
  #allocation2 [shape = 'f32[2,32]{1,0:T(2,128)}', space=vmem, size = 0x400, scoped, tag = 'scratch operand']
  %s0 = inlined_call_operand.vmem [shape: f32[2,8,1], index: 0, kind: input, shape index: {}]
  %s1 = inlined_call_operand.vmem [shape: f32[2,8,32], index: 1, kind: input, shape index: {}]
  %s2 = inlined_call_operand.hbm [shape: f32[2,32], index: 2, kind: output, shape index: {}]
  %s3 = sld [smem:[#allocation0]]
  $region26: #{tpu_custom_call.1} parent=0
    _
  %s5 = ssub.s32 1, %s3
  %s6 = scalar_select 0, %s5, %s3
  $region1: #{tpu_custom_call.1} parent=0
    #allocation3 [shape = 'u8[1024]{0}', space=vmem, size = 0x400, scoped, tag = 'output window, operand 0, single buffered']
    #allocation4 [shape = 's32[1]{0}', space=sflag, size = 0x4, scoped, tag = 'scoped memory for tpu_custom_call.1']
    %7 = vsyncpa [#allocation4], 0
    // Predicated region
    $region2: #{tpu_custom_call.1} parent=1 // pred_check
      _
    $region3: #{tpu_custom_call.1} parent=1 // pred_check_branch
      %9 = sbr.rel (0) target = $region5
    $region4: #{tpu_custom_call.1} parent=1 // pred_region
      _
    $region5: #{tpu_custom_call.1} parent=1 // pred_fallthru
      _
    // Predicated region
    $region6: #{tpu_custom_call.1} parent=1 // pred_check
      _
    $region7: #{tpu_custom_call.1} parent=1 // pred_check_branch
      %11 = sbr.rel (0) target = $region9
    $region8: #{tpu_custom_call.1} parent=1 // pred_region
      _
    $region9: #{tpu_custom_call.1} parent=1 // pred_fallthru
      _
    %p12 = scmp.eq.s32.totalorder 0, 0
    // Predicated region
    $region10: #{tpu_custom_call.1} parent=1 // pred_check
      %p13 = pneg %p12
    $region11: #{tpu_custom_call.1} parent=1 // pred_check_branch
      %15 = sbr.rel (%p13) target = $region13
    $region12: #{tpu_custom_call.1} parent=1 // pred_region
      %vm16 = vcmask 254976
      %17 = vst.msk [vmem:[#allocation2] sm:$0x3] %vm16, 0.0
    $region13: #{tpu_custom_call.1} parent=1 // pred_fallthru
      _
    %v18 = vld [vmem:[%s1] sm:$0xff]
    %v19 = vld [vmem:[%s1 + $0x8] sm:$0xff]
    %v20 = vld [vmem:[#allocation2] sm:$0x3]
    %v21 = vld [vmem:[%s0] sm:$0xff]
    %v22 = vld [vmem:[%s0 + $0x8] sm:$0xff]
    %24 = vset.pattern.permute.xlu0 0
    %25 = vperm.xlu0 %24, %v21
    %v26 = vpop.permute.xlu0 %25
    %29 = vset.pattern.permute.xlu0 0
    %30 = vperm.xlu0 %29, %v22
    %v31 = vpop.permute.xlu0 %30
    %v33 = vmul.f32 %v18, %v26
    %v34 = vmul.f32 %v19, %v31
    %vm35 = vcmask 261120
    %v36 = vsel %vm35, %v33, 0.0
    %v37 = vrot.slane %v36, 4
    %v38 = vadd.f32 %v36, %v37
    %v39 = vrot.slane %v38, 2
    %v40 = vadd.f32 %v38, %v39
    %v41 = vrot.slane %v40, 1
    %v42 = vadd.f32 %v40, %v41
    %v43 = vsel %vm35, %v34, 0.0
    %v44 = vrot.slane %v43, 4
    %v45 = vadd.f32 %v43, %v44
    %v46 = vrot.slane %v45, 2
    %v47 = vadd.f32 %v45, %v46
    %v48 = vrot.slane %v47, 1
    %v49 = vadd.f32 %v47, %v48
    %vm52 = vcmask 1041409
    %v53 = vsel %vm52, %v49, %v42
    %v55 = vadd.f32 %v20, %v53
    %vm56 = vcmask 254976
    %57 = vst.msk [vmem:[#allocation2] sm:$0x3] %vm56, %v55
    // Predicated region
    $region14: #{tpu_custom_call.1} parent=1 // pred_check
      %p58 = pneg %p12
    $region15: #{tpu_custom_call.1} parent=1 // pred_check_branch
      %60 = sbr.rel (%p58) target = $region17
    $region16: #{tpu_custom_call.1} parent=1 // pred_region
      %v61 = vld [vmem:[#allocation2] sm:$0x3]
      %62 = vst.msk [vmem:[#allocation3] sm:$0x3] %vm56, %v61
    $region17: #{tpu_custom_call.1} parent=1 // pred_fallthru
      _
    // Predicated region
    $region18: #{tpu_custom_call.1} parent=1 // pred_check
      _
    $region19: #{tpu_custom_call.1} parent=1 // pred_check_branch
      %64 = sbr.rel (0) target = $region21
    $region20: #{tpu_custom_call.1} parent=1 // pred_region
      %s66 = ssub.s32 32, 32
      %67 = vsyncadd [#allocation4], %s66
      %s69 = sshll.u32 [#allocation3], 4
      %s70 = int_to_ptr.vmem [resolvable:$true] %s69
      %72 = dma.vmem_to_hbm [thread:$0]  %s70, 32, %s2, [#allocation4]
    $region21: #{tpu_custom_call.1} parent=1 // pred_fallthru
      _
    // Predicated region
    $region22: #{tpu_custom_call.1} parent=1 // pred_check
      _
    $region23: #{tpu_custom_call.1} parent=1 // pred_check_branch
      %74 = sbr.rel (0) target = $region25
    $region24: #{tpu_custom_call.1} parent=1 // pred_region
      %75 = dma.done [#allocation4], 32
    $region25: #{tpu_custom_call.1} parent=1 // pred_fallthru
      _
    %76 = vsyncpa [#allocation4], 1

</llo_original>
